<compile_context>
chip_gen: v6e
topology: v6e:2x2x1
jax: 0.10.0
libtpu: 0.0.40
codegen_flags: <defaults>
</compile_context>

<pallas_src>
import jax
import jax.numpy as jnp
from jax.experimental import pallas as pl
from jax.experimental.pallas import tpu as pltpu


def _embed_add_kernel(tok_ref, enc_ref, out_ref):
    # tok_ref: (1, TILE_S, D) gathered token embeddings for this (batch, tile)
    # enc_ref: (TILE_S, D)    positional-encoding rows for this seq tile
    # out_ref: (1, TILE_S, D)
    out_ref[...] = (tok_ref[...] + enc_ref[...]).astype(out_ref.dtype)


def _choose_tile_s(seq_len, dim, itemsize, vmem_budget_bytes=16 * 1024 * 1024):
    """Largest seq tile (multiple of 8, divides seq_len) whose pipeline
    footprint (3 slabs x 2 double-buffers) fits comfortably in scoped VMEM."""
    if seq_len % 8 != 0:
        return None
    per_row = 6 * dim * itemsize
    max_rows = vmem_budget_bytes // per_row
    if max_rows < 8:
        return None
    for cand in (1024, 512, 256, 128, 64, 32, 16, 8):
        if cand <= max_rows and seq_len % cand == 0:
            return cand
    return None


def make_sinusoid_encoding(max_len, dim, dtype=jnp.float32):
    """Same table as the PyTorch PositionalEncoding.__init__ (even dim)."""
    pos = jnp.arange(max_len, dtype=jnp.float32)[:, None]      # [L, 1]
    two_i = jnp.arange(0, dim, 2, dtype=jnp.float32)           # [D/2]
    angles = pos / (10000.0 ** (two_i / dim))                  # [L, D/2]
    enc = jnp.zeros((max_len, dim), jnp.float32)
    enc = enc.at[:, 0::2].set(jnp.sin(angles))
    enc = enc.at[:, 1::2].set(jnp.cos(angles))
    return enc.astype(dtype)


def transformer_embedding(ids, emb_table, encoding):
    """TransformerEmbedding forward.

    ids:        [B, S] int32 token ids
    emb_table:  [vocab, D] learned token-embedding table
    encoding:   [max_len, D] sinusoidal positional-encoding table
    returns:    [B, S, D] = emb_table[ids] + encoding[:S]   (broadcast over B)
    """
    batch, seq_len = ids.shape
    _, dim = emb_table.shape
    max_len, enc_dim = encoding.shape
    assert enc_dim == dim, "dim mismatch between encoding table and embeddings"
    assert seq_len <= max_len, "sequence longer than positional-encoding table"

    # Token-embedding gather: XLA's native dynamic gather.
    # TODO(synk): fuse the row gather into the kernel (scalar-prefetch ids +
    # per-row DMA from the HBM table) to drop the token_emb HBM round trip.
    tok = jnp.take(emb_table, ids, axis=0)                      # [B, S, D]

    itemsize = jnp.dtype(tok.dtype).itemsize
    tile_s = _choose_tile_s(seq_len, dim, itemsize)

    # Degenerate / untileable / tiny shapes: launch + per-grid-step overhead
    # would dominate; a fused XLA slice+add wins on every generation.
    if tile_s is None or tok.size * itemsize < (32 << 10):
        return tok + encoding[:seq_len][None, :, :].astype(tok.dtype)

    grid = (batch, seq_len // tile_s)
    flops = batch * seq_len * dim                               # one add / element
    bytes_accessed = (
        tok.size * itemsize                                                 # read tok
        + batch * seq_len * dim * jnp.dtype(encoding.dtype).itemsize        # read enc tiles
        + tok.size * itemsize                                               # write out
    )

    return pl.pallas_call(
        _embed_add_kernel,
        out_shape=jax.ShapeDtypeStruct((batch, seq_len, dim), tok.dtype),
        grid_spec=pl.GridSpec(
            grid=grid,
            in_specs=[
                pl.BlockSpec((1, tile_s, dim), lambda b, s: (b, s, 0)),
                pl.BlockSpec((tile_s, dim), lambda b, s: (s, 0)),
            ],
            out_specs=pl.BlockSpec((1, tile_s, dim), lambda b, s: (b, s, 0)),
        ),
        compiler_params=pltpu.CompilerParams(
            dimension_semantics=("parallel", "parallel"),
        ),
        cost_estimate=pl.CostEstimate(
            flops=flops, transcendentals=0, bytes_accessed=bytes_accessed),
    )(tok, encoding)


if __name__ == "__main__":
    # Module hyperparameters (synthetic, deterministic init).
    vocab = 1000
    dim = 256          # lane-dense (multiple of 128)
    max_len = 256
    batch = 2
    seq_len = 128      # multiple of 8, large enough to exercise the kernel path

    key = jax.random.PRNGKey(0)
    k_emb, k_ids = jax.random.split(key)

    # nn.Embedding default init ~ N(0, 1).
    emb_table = jax.random.normal(k_emb, (vocab, dim), dtype=jnp.float32)
    ids = jax.random.randint(k_ids, (batch, seq_len), 0, vocab, dtype=jnp.int32)
    encoding = make_sinusoid_encoding(max_len, dim, dtype=jnp.float32)

    out = transformer_embedding(ids, emb_table, encoding)
    out = jax.block_until_ready(out)

    # Correctness check against the pure-JAX reference of the PyTorch forward.
    ref = jnp.take(emb_table, ids, axis=0) + encoding[:seq_len][None, :, :]
    assert out.shape == (batch, seq_len, dim)
    assert out.dtype == jnp.float32
    assert jnp.allclose(out, ref, atol=1e-6, rtol=1e-6)

    print("KERNEL_OK")
</pallas_src>

<mosaic_0001>
module attributes {stable_mosaic.version = 11 : i64} {
  func.func @_embed_add_kernel(%arg0: i32, %arg1: i32, %arg2: memref<1x128x256xf32, #tpu.memory_space<vmem>>, %arg3: memref<128x256xf32, #tpu.memory_space<vmem>>, %arg4: memref<1x128x256xf32, #tpu.memory_space<vmem>>) attributes {dimension_semantics = [#tpu.dimension_semantics<parallel>, #tpu.dimension_semantics<parallel>], iteration_bounds = array<i64: 2, 1>, scalar_prefetch = 0 : i64, scratch_operands = 0 : i64, tpu.core_type = #tpu.core_type<tc>, window_params = [{transform_indices = @transform_0, window_bounds = array<i64: 1, 128, 256>}, {transform_indices = @transform_1, window_bounds = array<i64: 128, 256>}, {transform_indices = @transform_2, window_bounds = array<i64: 1, 128, 256>}]} {
    %c0 = arith.constant 0 : index
    %c0_0 = arith.constant 0 : index
    %c0_1 = arith.constant 0 : index
    %0 = vector.load %arg2[%c0, %c0_0, %c0_1] : memref<1x128x256xf32, #tpu.memory_space<vmem>>, vector<1x128x256xf32>
    %c0_2 = arith.constant 0 : index
    %c0_3 = arith.constant 0 : index
    %1 = vector.load %arg3[%c0_2, %c0_3] : memref<128x256xf32, #tpu.memory_space<vmem>>, vector<128x256xf32>
    %2 = vector.shape_cast %1 : vector<128x256xf32> to vector<1x128x256xf32>
    %3 = arith.addf %0, %2 : vector<1x128x256xf32>
    %c0_4 = arith.constant 0 : index
    %c0_5 = arith.constant 0 : index
    %c0_6 = arith.constant 0 : index
    %4 = vector.load %arg4[%c0_4, %c0_5, %c0_6] : memref<1x128x256xf32, #tpu.memory_space<vmem>>, vector<1x128x256xf32>
    tpu.vector_store %arg4[%c0_4, %c0_5, %c0_6], %3 {strides = array<i32>} : memref<1x128x256xf32, #tpu.memory_space<vmem>>, vector<1x128x256xf32>,
    return
  }
  func.func @transform_0(%arg0: i32, %arg1: i32) -> (i32, i32, i32) {
    %c0_i32 = arith.constant 0 : i32
    %c0_i32_0 = arith.constant 0 : i32
    return %arg0, %arg1, %c0_i32 : i32, i32, i32
  }
  func.func @transform_1(%arg0: i32, %arg1: i32) -> (i32, i32) {
    %c0_i32 = arith.constant 0 : i32
    %c0_i32_0 = arith.constant 0 : i32
    return %arg1, %c0_i32 : i32, i32
  }
  func.func @transform_2(%arg0: i32, %arg1: i32) -> (i32, i32, i32) {
    %c0_i32 = arith.constant 0 : i32
    %c0_i32_0 = arith.constant 0 : i32
    return %arg0, %arg1, %c0_i32 : i32, i32, i32
  }
}

</mosaic_0001>

<llo_original>
// kernel: tpu_custom_call.1
$region0: #{tpu_custom_call.1}
  #allocation0 [shape = 'u32[]', space=smem, size = 0x4, offset = 0x4, fixed_abs, tag = 'smem constant byte address 0x4 - core index']
  #allocation1 [shape = 'u32[144,128]{1,0:T(1,128)}', space=vmem, size = 0x12000, scoped, tag = 'internal scratch']
  %s0 = inlined_call_operand.hbm [shape: f32[2,128,256], index: 0, kind: input, shape index: {}]
  %s1 = inlined_call_operand.hbm [shape: f32[256,256], index: 1, kind: input, shape index: {}]
  %s2 = inlined_call_operand.hbm [shape: f32[2,128,256], index: 2, kind: output, shape index: {}]
  %s3 = sld [smem:[#allocation0]]
  $region49: #{tpu_custom_call.1} parent=0
    _
  %s5 = ssub.s32 1, %s3
  %s6 = scalar_select 0, %s5, %s3
  $region1: #{tpu_custom_call.1} parent=0
    #allocation2 [shape = 'u8[262144]{0}', space=vmem, size = 0x40000, scoped, tag = 'input window, operand 0']
    #allocation3 [shape = 's32[2]{0}', space=sflag, size = 0x8, scoped, tag = 'scoped memory for tpu_custom_call.1']
    #allocation4 [shape = 's32[2]{0}', space=sflag, size = 0x8, scoped, tag = 'scoped memory for tpu_custom_call.1']
    #allocation5 [shape = 'u8[131072]{0}', space=vmem, size = 0x20000, scoped, tag = 'input window, operand 1, single buffered']
    #allocation6 [shape = 's32[1]{0}', space=sflag, size = 0x4, scoped, tag = 'scoped memory for tpu_custom_call.1']
    #allocation7 [shape = 'u8[262144]{0}', space=vmem, size = 0x40000, scoped, tag = 'output window, operand 0']
    %7 = vsyncpa [#allocation3], 0
    %s8 = scalar_lea.sflag [#allocation3], 1
    %9 = vsyncpa %s8, 0
    %10 = vsyncpa [#allocation6], 0
    %11 = vsyncpa [#allocation4], 0
    %s12 = scalar_lea.sflag [#allocation4], 1
    %13 = vsyncpa %s12, 0
    loop: start=0, step=1, limit=4
    $region2: #{tpu_custom_call.1} parent=1 // loop_pre_header
      _
    $region3: #{tpu_custom_call.1} parent=1 // loop_header
      %s15 = sphi 0, %s19
      %p16 = scmp.ge.s32.totalorder %s15, 4
      %s22 = sphi 0, %s34
      %s23 = sphi 0, %s30
      %s24 = sphi 0, %s22
      %s25 = sphi 0, %s23
      %s26 = sphi 0, %s24
      %s27 = sphi 0, %s25
      %s39 = sphi 0, %s41
      %s42 = sphi 0, %s39
      %s43 = sphi 0, %s42
      %s59 = sphi 0, %s43
      %s65 = sphi 0, %s67
      %s68 = sphi 0, %s65
      %s69 = sphi 0, %s68
      %s85 = sphi 0, %s69
      %s93 = sphi 0, %s95
      %s96 = sphi 0, %s93
      %s97 = sphi 0, %s96
      %s113 = sphi 0, %s97
    $region4: #{tpu_custom_call.1} parent=1 // loop_header_branch
      %18 = sbr.rel (%p16) target = $region8
    $region5: #{tpu_custom_call.1} parent=1 // loop_body
      %s20 = ssub.s32 %s15, 1
      %s21 = ssub.s32 %s15, 2
      %s28 = sadd.s32 1, %s23
      %p29 = scmp.ge.s32.totalorder %s28, 1
      %s30 = scalar_select %p29, 0, %s28
      %s31 = sadd.s32 1, %s22
      %s32 = scalar_select %p29, %s31, %s22
      %p33 = scmp.ge.s32.totalorder %s32, 2
      %s34 = scalar_select %p33, 0, %s32
      %s35 = ssub.s32 %s22, %s34
      %s36 = ssub.s32 %s23, %s30
      %s37 = sor.u32 %s35, %s36
      %p38 = scmp.eq.s32.totalorder %s37, 0
      %s40 = sadd.s32 %s39, 1
      %s41 = scalar_select %p38, %s39, %s40
      %p44 = pneg %p38
      %p45 = scmp.eq.s32.totalorder %s15, 1
      %p46 = por %p44, %p45
      %p47 = scmp.ne.s32.totalorder %s39, %s42
      %p48 = scmp.eq.s32.totalorder %s15, 0
      %p49 = por %p47, %p48
      %p50 = scmp.ne.s32.totalorder %s39, %s42
      %p51 = scmp.eq.s32.totalorder %s20, 1
      %p52 = por %p50, %p51
      %p53 = scmp.ne.s32.totalorder %s42, %s43
      %p54 = scmp.eq.s32.totalorder %s20, 0
      %p55 = por %p53, %p54
      %p56 = scmp.ne.s32.totalorder %s42, %s43
      %p57 = scmp.eq.s32.totalorder %s21, 1
      %p58 = por %p56, %p57
      %p60 = scmp.ne.s32.totalorder %s43, %s59
      %p61 = scmp.eq.s32.totalorder %s21, 0
      %p62 = por %p60, %p61
      %s63 = ssub.s32 %s23, %s30
      %p64 = scmp.eq.s32.totalorder %s63, 0
      %s66 = sadd.s32 %s65, 1
      %s67 = scalar_select %p64, %s65, %s66
      %p70 = pneg %p64
      %p71 = scmp.eq.s32.totalorder %s15, 1
      %p72 = por %p70, %p71
      %p73 = scmp.ne.s32.totalorder %s65, %s68
      %p74 = scmp.eq.s32.totalorder %s15, 0
      %p75 = por %p73, %p74
      %p76 = scmp.ne.s32.totalorder %s65, %s68
      %p77 = scmp.eq.s32.totalorder %s20, 1
      %p78 = por %p76, %p77
      %p79 = scmp.ne.s32.totalorder %s68, %s69
      %p80 = scmp.eq.s32.totalorder %s20, 0
      %p81 = por %p79, %p80
      %p82 = scmp.ne.s32.totalorder %s68, %s69
      %p83 = scmp.eq.s32.totalorder %s21, 1
      %p84 = por %p82, %p83
      %p86 = scmp.ne.s32.totalorder %s69, %s85
      %p87 = scmp.eq.s32.totalorder %s21, 0
      %p88 = por %p86, %p87
      %s89 = ssub.s32 %s22, %s34
      %s90 = ssub.s32 %s23, %s30
      %s91 = sor.u32 %s89, %s90
      %p92 = scmp.eq.s32.totalorder %s91, 0
      %s94 = sadd.s32 %s93, 1
      %s95 = scalar_select %p92, %s93, %s94
      %p98 = pneg %p92
      %p99 = scmp.eq.s32.totalorder %s15, 1
      %p100 = por %p98, %p99
      %p101 = scmp.ne.s32.totalorder %s93, %s96
      %p102 = scmp.eq.s32.totalorder %s15, 0
      %p103 = por %p101, %p102
      %p104 = scmp.ne.s32.totalorder %s93, %s96
      %p105 = scmp.eq.s32.totalorder %s20, 1
      %p106 = por %p104, %p105
      %p107 = scmp.ne.s32.totalorder %s96, %s97
      %p108 = scmp.eq.s32.totalorder %s20, 0
      %p109 = por %p107, %p108
      %p110 = scmp.ne.s32.totalorder %s96, %s97
      %p111 = scmp.eq.s32.totalorder %s21, 1
      %p112 = por %p110, %p111
      %p114 = scmp.ne.s32.totalorder %s97, %s113
      %p115 = scmp.eq.s32.totalorder %s21, 0
      %p116 = por %p114, %p115
      %p117 = scmp.le.s32.totalorder 1, %s15
      %p118 = scmp.lt.s32.totalorder %s15, 3
      %p119 = pnand %p117, %p118
      %p120 = pneg %p119
      // Predicated region
      $region9: #{tpu_custom_call.1} parent=5 // pred_check
        _
      $region10: #{tpu_custom_call.1} parent=5 // pred_check_branch
        %122 = sbr.rel (%p119) target = $region12
      $region11: #{tpu_custom_call.1} parent=5 // pred_region
        %s123 = ssub.s32 %s15, 1
        // Predicated region
        $region13: #{tpu_custom_call.1} parent=11 // pred_check
          %p124 = pneg %p81
        $region14: #{tpu_custom_call.1} parent=11 // pred_check_branch
          %126 = sbr.rel (%p124) target = $region16
        $region15: #{tpu_custom_call.1} parent=11 // pred_region
          %s127 = smul.u32 16, %s25
          %s129 = ssub.s32 4096, 4096
          %130 = vsyncadd [#allocation6], %s129
          %s131 = smul.addr %s127, 2
          %s132 = smul.addr %s131, 128
          %s133 = scalar_lea.hbm %s1, %s132
          %s134 = sshll.u32 [#allocation5], 4
          %s135 = int_to_ptr.vmem [resolvable:$true] %s134
          %140 = dma.hbm_to_vmem [thread:$0]  %s133, 4096, %s135, [#allocation6], 256, 256, 16
        $region16: #{tpu_custom_call.1} parent=11 // pred_fallthru
          _
      $region12: #{tpu_custom_call.1} parent=5 // pred_fallthru
        _
      %p141 = scmp.lt.s32.totalorder %s15, 2
      // Predicated region
      $region17: #{tpu_custom_call.1} parent=5 // pred_check
        %p142 = pneg %p141
      $region18: #{tpu_custom_call.1} parent=5 // pred_check_branch
        %144 = sbr.rel (%p142) target = $region20
      $region19: #{tpu_custom_call.1} parent=5 // pred_region
        // Predicated region
        $region21: #{tpu_custom_call.1} parent=19 // pred_check
          %p145 = pneg %p49
        $region22: #{tpu_custom_call.1} parent=19 // pred_check_branch
          %147 = sbr.rel (%p145) target = $region24
        $region23: #{tpu_custom_call.1} parent=19 // pred_region
          %s148 = sand.u32 %s39, 1
          %s149 = scalar_lea.sflag [#allocation3], %s148
          %s150 = sand.u32 %s39, 1
          %s151 = smul.addr %s150, 256
          %s152 = scalar_lea.vmem [#allocation2], %s151
          %s153 = smul.u32 16, %s23
          %s155 = ssub.s32 4096, 4096
          %156 = vsyncadd %s149, %s155
          %s157 = smul.addr %s153, 2
          %s158 = smul.addr %s22, 32
          %s159 = sadd.s32 %s157, %s158
          %s160 = smul.addr %s159, 128
          %s161 = scalar_lea.hbm %s0, %s160
          %s162 = sshll.u32 %s152, 4
          %s163 = int_to_ptr.vmem [resolvable:$true] %s162
          %168 = dma.hbm_to_vmem [thread:$0]  %s161, 4096, %s163, %s149, 256, 256, 16
        $region24: #{tpu_custom_call.1} parent=19 // pred_fallthru
          _
      $region20: #{tpu_custom_call.1} parent=5 // pred_fallthru
        _
      %p169 = scmp.le.s32.totalorder 1, %s15
      %p170 = scmp.lt.s32.totalorder %s15, 3
      %p171 = pnand %p169, %p170
      %p172 = pneg %p171
      // Predicated region
      $region25: #{tpu_custom_call.1} parent=5 // pred_check
        _
      $region26: #{tpu_custom_call.1} parent=5 // pred_check_branch
        %174 = sbr.rel (%p171) target = $region28
      $region27: #{tpu_custom_call.1} parent=5 // pred_region
        %s175 = ssub.s32 %s15, 1
        %s176 = sand.u32 %s42, 1
        %s177 = scalar_lea.sflag [#allocation3], %s176
        %s178 = sand.u32 %s42, 1
        %s179 = smul.addr %s178, 256
        %s180 = scalar_lea.vmem [#allocation2], %s179
        // Predicated region
        $region29: #{tpu_custom_call.1} parent=27 // pred_check
          %p181 = pneg %p55
        $region30: #{tpu_custom_call.1} parent=27 // pred_check_branch
          %183 = sbr.rel (%p181) target = $region32
        $region31: #{tpu_custom_call.1} parent=27 // pred_region
          %184 = dma.done %s177, 4096
        $region32: #{tpu_custom_call.1} parent=27 // pred_fallthru
          _
        // Predicated region
        $region33: #{tpu_custom_call.1} parent=27 // pred_check
          %p185 = pneg %p81
        $region34: #{tpu_custom_call.1} parent=27 // pred_check_branch
          %187 = sbr.rel (%p185) target = $region36
        $region35: #{tpu_custom_call.1} parent=27 // pred_region
          %188 = dma.done [#allocation6], 4096
        $region36: #{tpu_custom_call.1} parent=27 // pred_fallthru
          _
        %s189 = sand.u32 %s42, 1
        %s190 = scalar_lea.sflag [#allocation3], %s189
        %s191 = sand.u32 %s42, 1
        %s192 = smul.addr %s191, 256
        %s193 = scalar_lea.vmem [#allocation2], %s192
        %p194 = pneg %p55
        %p195 = pneg %p52
        %p196 = pneg %p81
        %p197 = pneg %p78
        %p198 = pneg %p109
        %p199 = pneg %p106
        %s200 = sand.u32 %s96, 1
        %s201 = scalar_lea.sflag [#allocation4], %s200
        %s202 = sand.u32 %s96, 1
        %s203 = smul.addr %s202, 256
        %s204 = scalar_lea.vmem [#allocation7], %s203
        %s205 = smul.u32 16, %s25
        %s206 = smul.u32 16, %s25
        %s207 = smul.u32 16, %s25
        %v208 = vld [vmem:[%s180] sm:$0xff]
        %v209 = vld [vmem:[%s180 + $0x8] sm:$0xff]
        %v210 = vld [vmem:[%s180 + $0x10] sm:$0xff]
        %v211 = vld [vmem:[%s180 + $0x18] sm:$0xff]
        %v212 = vld [vmem:[%s180 + $0x20] sm:$0xff]
        %v213 = vld [vmem:[%s180 + $0x28] sm:$0xff]
        %v214 = vld [vmem:[%s180 + $0x30] sm:$0xff]
        %v215 = vld [vmem:[%s180 + $0x38] sm:$0xff]
        %v216 = vld [vmem:[%s180 + $0x40] sm:$0xff]
        %v217 = vld [vmem:[%s180 + $0x48] sm:$0xff]
        %v218 = vld [vmem:[%s180 + $0x50] sm:$0xff]
        %v219 = vld [vmem:[%s180 + $0x58] sm:$0xff]
        %v220 = vld [vmem:[%s180 + $0x60] sm:$0xff]
        %v221 = vld [vmem:[%s180 + $0x68] sm:$0xff]
        %v222 = vld [vmem:[%s180 + $0x70] sm:$0xff]
        %v223 = vld [vmem:[%s180 + $0x78] sm:$0xff]
        %v224 = vld [vmem:[%s180 + $0x80] sm:$0xff]
        %v225 = vld [vmem:[%s180 + $0x88] sm:$0xff]
        %v226 = vld [vmem:[%s180 + $0x90] sm:$0xff]
        %v227 = vld [vmem:[%s180 + $0x98] sm:$0xff]
        %v228 = vld [vmem:[%s180 + $0xa0] sm:$0xff]
        %v229 = vld [vmem:[%s180 + $0xa8] sm:$0xff]
        %v230 = vld [vmem:[%s180 + $0xb0] sm:$0xff]
        %v231 = vld [vmem:[%s180 + $0xb8] sm:$0xff]
        %v232 = vld [vmem:[%s180 + $0xc0] sm:$0xff]
        %v233 = vld [vmem:[%s180 + $0xc8] sm:$0xff]
        %v234 = vld [vmem:[%s180 + $0xd0] sm:$0xff]
        %v235 = vld [vmem:[%s180 + $0xd8] sm:$0xff]
        %v236 = vld [vmem:[%s180 + $0xe0] sm:$0xff]
        %v237 = vld [vmem:[%s180 + $0xe8] sm:$0xff]
        %v238 = vld [vmem:[%s180 + $0xf0] sm:$0xff]
        %v239 = vld [vmem:[%s180 + $0xf8] sm:$0xff]
        %v240 = vld [vmem:[#allocation5] sm:$0xff]
        %v241 = vld [vmem:[#allocation5 + $0x8] sm:$0xff]
        %v242 = vld [vmem:[#allocation5 + $0x10] sm:$0xff]
        %v243 = vld [vmem:[#allocation5 + $0x18] sm:$0xff]
        %v244 = vld [vmem:[#allocation5 + $0x20] sm:$0xff]
        %v245 = vld [vmem:[#allocation5 + $0x28] sm:$0xff]
        %v246 = vld [vmem:[#allocation5 + $0x30] sm:$0xff]
        %v247 = vld [vmem:[#allocation5 + $0x38] sm:$0xff]
        %v248 = vld [vmem:[#allocation5 + $0x40] sm:$0xff]
        %v249 = vld [vmem:[#allocation5 + $0x48] sm:$0xff]
        %v250 = vld [vmem:[#allocation5 + $0x50] sm:$0xff]
        %v251 = vld [vmem:[#allocation5 + $0x58] sm:$0xff]
        %v252 = vld [vmem:[#allocation5 + $0x60] sm:$0xff]
        %v253 = vld [vmem:[#allocation5 + $0x68] sm:$0xff]
        %v254 = vld [vmem:[#allocation5 + $0x70] sm:$0xff]
        %v255 = vld [vmem:[#allocation5 + $0x78] sm:$0xff]
        %v256 = vld [vmem:[#allocation5 + $0x80] sm:$0xff]
        %v257 = vld [vmem:[#allocation5 + $0x88] sm:$0xff]
        %v258 = vld [vmem:[#allocation5 + $0x90] sm:$0xff]
        %v259 = vld [vmem:[#allocation5 + $0x98] sm:$0xff]
        %v260 = vld [vmem:[#allocation5 + $0xa0] sm:$0xff]
        %v261 = vld [vmem:[#allocation5 + $0xa8] sm:$0xff]
        %v262 = vld [vmem:[#allocation5 + $0xb0] sm:$0xff]
        %v263 = vld [vmem:[#allocation5 + $0xb8] sm:$0xff]
        %v264 = vld [vmem:[#allocation5 + $0xc0] sm:$0xff]
        %v265 = vld [vmem:[#allocation5 + $0xc8] sm:$0xff]
        %v266 = vld [vmem:[#allocation5 + $0xd0] sm:$0xff]
        %v267 = vld [vmem:[#allocation5 + $0xd8] sm:$0xff]
        %v268 = vld [vmem:[#allocation5 + $0xe0] sm:$0xff]
        %v269 = vld [vmem:[#allocation5 + $0xe8] sm:$0xff]
        %v270 = vld [vmem:[#allocation5 + $0xf0] sm:$0xff]
        %v271 = vld [vmem:[#allocation5 + $0xf8] sm:$0xff]
        %v272 = vadd.f32 %v208, %v240
        %v273 = vadd.f32 %v209, %v241
        %v274 = vadd.f32 %v210, %v242
        %v275 = vadd.f32 %v211, %v243
        %v276 = vadd.f32 %v212, %v244
        %v277 = vadd.f32 %v213, %v245
        %v278 = vadd.f32 %v214, %v246
        %v279 = vadd.f32 %v215, %v247
        %v280 = vadd.f32 %v216, %v248
        %v281 = vadd.f32 %v217, %v249
        %v282 = vadd.f32 %v218, %v250
        %v283 = vadd.f32 %v219, %v251
        %v284 = vadd.f32 %v220, %v252
        %v285 = vadd.f32 %v221, %v253
        %v286 = vadd.f32 %v222, %v254
        %v287 = vadd.f32 %v223, %v255
        %v288 = vadd.f32 %v224, %v256
        %v289 = vadd.f32 %v225, %v257
        %v290 = vadd.f32 %v226, %v258
        %v291 = vadd.f32 %v227, %v259
        %v292 = vadd.f32 %v228, %v260
        %v293 = vadd.f32 %v229, %v261
        %v294 = vadd.f32 %v230, %v262
        %v295 = vadd.f32 %v231, %v263
        %v296 = vadd.f32 %v232, %v264
        %v297 = vadd.f32 %v233, %v265
        %v298 = vadd.f32 %v234, %v266
        %v299 = vadd.f32 %v235, %v267
        %v300 = vadd.f32 %v236, %v268
        %v301 = vadd.f32 %v237, %v269
        %v302 = vadd.f32 %v238, %v270
        %v303 = vadd.f32 %v239, %v271
        %304 = vst [vmem:[%s204] sm:$0xff] %v272
        %305 = vst [vmem:[%s204 + $0x8] sm:$0xff] %v273
        %306 = vst [vmem:[%s204 + $0x10] sm:$0xff] %v274
        %307 = vst [vmem:[%s204 + $0x18] sm:$0xff] %v275
        %308 = vst [vmem:[%s204 + $0x20] sm:$0xff] %v276
        %309 = vst [vmem:[%s204 + $0x28] sm:$0xff] %v277
        %310 = vst [vmem:[%s204 + $0x30] sm:$0xff] %v278
        %311 = vst [vmem:[%s204 + $0x38] sm:$0xff] %v279
        %312 = vst [vmem:[%s204 + $0x40] sm:$0xff] %v280
        %313 = vst [vmem:[%s204 + $0x48] sm:$0xff] %v281
        %314 = vst [vmem:[%s204 + $0x50] sm:$0xff] %v282
        %315 = vst [vmem:[%s204 + $0x58] sm:$0xff] %v283
        %316 = vst [vmem:[%s204 + $0x60] sm:$0xff] %v284
        %317 = vst [vmem:[%s204 + $0x68] sm:$0xff] %v285
        %318 = vst [vmem:[%s204 + $0x70] sm:$0xff] %v286
        %319 = vst [vmem:[%s204 + $0x78] sm:$0xff] %v287
        %320 = vst [vmem:[%s204 + $0x80] sm:$0xff] %v288
        %321 = vst [vmem:[%s204 + $0x88] sm:$0xff] %v289
        %322 = vst [vmem:[%s204 + $0x90] sm:$0xff] %v290
        %323 = vst [vmem:[%s204 + $0x98] sm:$0xff] %v291
        %324 = vst [vmem:[%s204 + $0xa0] sm:$0xff] %v292
        %325 = vst [vmem:[%s204 + $0xa8] sm:$0xff] %v293
        %326 = vst [vmem:[%s204 + $0xb0] sm:$0xff] %v294
        %327 = vst [vmem:[%s204 + $0xb8] sm:$0xff] %v295
        %328 = vst [vmem:[%s204 + $0xc0] sm:$0xff] %v296
        %329 = vst [vmem:[%s204 + $0xc8] sm:$0xff] %v297
        %330 = vst [vmem:[%s204 + $0xd0] sm:$0xff] %v298
        %331 = vst [vmem:[%s204 + $0xd8] sm:$0xff] %v299
        %332 = vst [vmem:[%s204 + $0xe0] sm:$0xff] %v300
        %333 = vst [vmem:[%s204 + $0xe8] sm:$0xff] %v301
        %334 = vst [vmem:[%s204 + $0xf0] sm:$0xff] %v302
        %335 = vst [vmem:[%s204 + $0xf8] sm:$0xff] %v303
        %s336 = sand.u32 %s96, 1
        %s337 = scalar_lea.sflag [#allocation4], %s336
        %s338 = sand.u32 %s96, 1
        %s339 = smul.addr %s338, 256
        %s340 = scalar_lea.vmem [#allocation7], %s339
        // Predicated region
        $region37: #{tpu_custom_call.1} parent=27 // pred_check
          %p341 = pneg %p106
        $region38: #{tpu_custom_call.1} parent=27 // pred_check_branch
          %343 = sbr.rel (%p341) target = $region40
        $region39: #{tpu_custom_call.1} parent=27 // pred_region
          %s344 = smul.u32 16, %s25
          %s346 = ssub.s32 4096, 4096
          %347 = vsyncadd %s337, %s346
          %s348 = smul.addr %s344, 2
          %s349 = smul.addr %s24, 32
          %s350 = sadd.s32 %s348, %s349
          %s351 = smul.addr %s350, 128
          %s352 = scalar_lea.hbm %s2, %s351
          %s353 = sshll.u32 %s340, 4
          %s354 = int_to_ptr.vmem [resolvable:$true] %s353
          %359 = dma.vmem_to_hbm [thread:$0]  %s354, 4096, %s352, %s337, 256, 256, 16
        $region40: #{tpu_custom_call.1} parent=27 // pred_fallthru
          _
      $region28: #{tpu_custom_call.1} parent=5 // pred_fallthru
        _
      %p360 = scmp.le.s32.totalorder 2, %s15
      // Predicated region
      $region41: #{tpu_custom_call.1} parent=5 // pred_check
        %p361 = pneg %p360
      $region42: #{tpu_custom_call.1} parent=5 // pred_check_branch
        %363 = sbr.rel (%p361) target = $region44
      $region43: #{tpu_custom_call.1} parent=5 // pred_region
        %s364 = ssub.s32 %s15, 2
        // Predicated region
        $region45: #{tpu_custom_call.1} parent=43 // pred_check
          %p365 = pneg %p112
        $region46: #{tpu_custom_call.1} parent=43 // pred_check_branch
          %367 = sbr.rel (%p365) target = $region48
        $region47: #{tpu_custom_call.1} parent=43 // pred_region
          %s368 = sand.u32 %s97, 1
          %s369 = scalar_lea.sflag [#allocation4], %s368
          %s370 = sand.u32 %s97, 1
          %s371 = smul.addr %s370, 256
          %s372 = scalar_lea.vmem [#allocation7], %s371
          %373 = dma.done %s369, 4096
        $region48: #{tpu_custom_call.1} parent=43 // pred_fallthru
          _
      $region44: #{tpu_custom_call.1} parent=5 // pred_fallthru
        _
    $region6: #{tpu_custom_call.1} parent=1 // loop_footer
      %s19 = sadd.s32 1, %s15
    $region7: #{tpu_custom_call.1} parent=1 // loop_footer_branch
      %14 = sbr.rel target = $region3
    $region8: #{tpu_custom_call.1} parent=1 // loop_exit
      _
    %374 = vsyncpa [#allocation3], 1
    %s375 = scalar_lea.sflag [#allocation3], 1
    %376 = vsyncpa %s375, 1
    %377 = vsyncpa [#allocation6], 1
    %378 = vsyncpa [#allocation4], 1
    %s379 = scalar_lea.sflag [#allocation4], 1
    %380 = vsyncpa %s379, 1

</llo_original>
